<compile_context>
chip_gen: v7x
topology: tpu7x:2x2x1
jax: 0.10.0
libtpu: 0.0.40
codegen_flags: <defaults>
</compile_context>

<pallas_src>
import functools

import jax
import jax.numpy as jnp
from jax.experimental import pallas as pl
from jax.experimental.pallas import tpu as pltpu

KS = 7          # kernel_size of the depthwise Conv1d
PAD = KS // 2   # same-padding


# ---------------------------------------------------------------------------
# Tiling helper: largest multiple-of-8 divisor of h whose x-tile stays small
# enough that double-buffered in+out tiles sit comfortably in scoped VMEM.
# ---------------------------------------------------------------------------
def _pick_h_tile(h, c, w, itemsize, target_bytes=2 * 1024 * 1024):
    if h % 8 != 0:
        return h                       # small / odd H: full extent
    best = 8
    for t in range(8, h + 1, 8):
        if h % t == 0 and c * t * w * itemsize <= target_bytes:
            best = t
    return best


# ---------------------------------------------------------------------------
# Stage A1: fused single-pass pooling.
#   x (b, c, h, w)  ->  x_h_mean (b, c, h, 1) f32,  x_w_mean (b, c, 1, w) f32
#   Grid (b, h_tiles); the x_w output is an accumulator across the h axis.
# ---------------------------------------------------------------------------
def _pool_kernel(x_ref, xh_ref, xw_ref, *, inv_w, inv_h):
    ih = pl.program_id(1)
    xf = x_ref[...].astype(jnp.float32)                       # (1, c, th, w)

    # mean over W for these rows (full W is present in the tile) -> lane reduce
    xh_ref[...] = jnp.sum(xf, axis=3, keepdims=True) * inv_w  # (1, c, th, 1)

    # partial mean over H, accumulated across h tiles (VMEM-resident output)
    part = jnp.sum(xf, axis=2, keepdims=True) * inv_h         # (1, c, 1, w)

    @pl.when(ih == 0)
    def _():
        xw_ref[...] = jnp.zeros_like(xw_ref)

    xw_ref[...] += part


def _pool(x, h_tile):
    b, c, h, w = x.shape
    kern = functools.partial(_pool_kernel, inv_w=1.0 / w, inv_h=1.0 / h)
    return pl.pallas_call(
        kern,
        out_shape=(jax.ShapeDtypeStruct((b, c, h, 1), jnp.float32),
                   jax.ShapeDtypeStruct((b, c, 1, w), jnp.float32)),
        grid_spec=pltpu.PrefetchScalarGridSpec(
            num_scalar_prefetch=0,
            grid=(b, h // h_tile),
            in_specs=[
                pl.BlockSpec((1, c, h_tile, w), lambda ib, ih: (ib, 0, ih, 0)),
            ],
            out_specs=[
                pl.BlockSpec((1, c, h_tile, 1), lambda ib, ih: (ib, 0, ih, 0)),
                pl.BlockSpec((1, c, 1, w),      lambda ib, ih: (ib, 0, 0, 0)),
            ],
        ),
        compiler_params=pltpu.CompilerParams(
            dimension_semantics=("parallel", "arbitrary"),  # h axis is a reduction
            vmem_limit_bytes=32 * 1024 * 1024,
        ),
    )(x)


# ---------------------------------------------------------------------------
# Stage A2: attention path on both pooled descriptors (single launch).
#   a = sigmoid(dwconv(hswish(bn(dwconv(v)))))     (same dwconv weights reused)
# ---------------------------------------------------------------------------
def _atten_kernel(vh_ref, vw_ref, w_ref, scale_ref, shift_ref, ah_ref, aw_ref):
    wt = w_ref[...]                          # (c, KS)  f32
    scale = scale_ref[...]                   # (c, 1)   folded BN scale
    shift = shift_ref[...]                   # (c, 1)   folded BN shift

    def path(v):                             # v: (b, c, L) f32
        L = v.shape[-1]

        def dwconv(t):
            # depthwise 1-D conv along the last (lane) axis, zero "same" padding.
            zpad = jnp.zeros(t.shape[:-1] + (PAD,), t.dtype)
            tp = jnp.concatenate([zpad, t, zpad], axis=-1)   # (b, c, L + KS - 1)
            out = jnp.zeros_like(t)
            for k in range(KS):                              # static lane shifts
                out = out + tp[:, :, k:k + L] * wt[:, k][None, :, None]
            return out

        t = dwconv(v)
        t = t * scale[None, :, :] + shift[None, :, :]        # eval-mode BN
        t = t * jnp.clip(t + 3.0, 0.0, 6.0) * (1.0 / 6.0)    # h_swish
        t = dwconv(t)
        return jax.nn.sigmoid(t)

    ah_ref[...] = path(vh_ref[...].astype(jnp.float32)).astype(ah_ref.dtype)
    aw_ref[...] = path(vw_ref[...].astype(jnp.float32)).astype(aw_ref.dtype)


def _atten(vh, vw, wt, scale, shift, out_dtype):
    b, c, h = vh.shape
    w = vw.shape[-1]
    return pl.pallas_call(
        _atten_kernel,
        out_shape=(jax.ShapeDtypeStruct((b, c, h), out_dtype),
                   jax.ShapeDtypeStruct((b, c, w), out_dtype)),
        in_specs=[pl.BlockSpec(memory_space=pltpu.MemorySpace.VMEM)] * 5,
        out_specs=[pl.BlockSpec(memory_space=pltpu.MemorySpace.VMEM)] * 2,
    )(vh, vw, wt, scale, shift)


# ---------------------------------------------------------------------------
# Stage B: tiled elementwise apply  y = x * a_w * a_h   (NCHW, W on lanes)
# ---------------------------------------------------------------------------
def _apply_kernel(x_ref, ah_ref, aw_ref, o_ref):
    x = x_ref[...]          # (1, c, th, w)
    ah = ah_ref[...]        # (1, c, th, 1)   broadcast over W
    aw = aw_ref[...]        # (1, c, 1, w)    broadcast over H
    # per-tile broadcasts only; same multiplication order as PyTorch.
    o_ref[...] = (x * aw * ah).astype(o_ref.dtype)


def _apply(x, a_h, a_w, h_tile):
    b, c, h, w = x.shape
    return pl.pallas_call(
        _apply_kernel,
        out_shape=jax.ShapeDtypeStruct((b, c, h, w), x.dtype),
        grid_spec=pltpu.PrefetchScalarGridSpec(
            num_scalar_prefetch=0,
            grid=(b, h // h_tile),
            in_specs=[
                pl.BlockSpec((1, c, h_tile, w), lambda ib, ih: (ib, 0, ih, 0)),
                pl.BlockSpec((1, c, h_tile, 1), lambda ib, ih: (ib, 0, ih, 0)),
                pl.BlockSpec((1, c, 1, w),      lambda ib, ih: (ib, 0, 0, 0)),
            ],
            out_specs=pl.BlockSpec((1, c, h_tile, w),
                                   lambda ib, ih: (ib, 0, ih, 0)),
        ),
        compiler_params=pltpu.CompilerParams(
            dimension_semantics=("parallel", "parallel"),   # megacore-friendly
            vmem_limit_bytes=32 * 1024 * 1024,
        ),
    )(x, a_h, a_w)


# ---------------------------------------------------------------------------
# Wrapper (pure NCHW, no transposes; x touches HBM exactly 2 reads + 1 write)
# ---------------------------------------------------------------------------
def ca_atten(x_nchw, conv_w, bn_gamma, bn_beta, bn_mean, bn_var, eps=1e-5):
    """x_nchw: (b, c, h, w).  conv_w: (c, KS) depthwise Conv1d weight (squeezed)."""
    b, c, h, w = x_nchw.shape
    dt = x_nchw.dtype

    # Folded eval-mode BatchNorm1d (see TODO at top of file).
    scale = (bn_gamma.astype(jnp.float32) /
             jnp.sqrt(bn_var.astype(jnp.float32) + eps))
    shift = bn_beta.astype(jnp.float32) - bn_mean.astype(jnp.float32) * scale
    scale = scale.reshape(c, 1)
    shift = shift.reshape(c, 1)
    wt = conv_w.astype(jnp.float32)                       # (c, KS)

    h_tile = _pick_h_tile(h, c, w, jnp.dtype(dt).itemsize)

    # Stage A1: fused single-pass pooling (one read of x gives both means).
    xh4, xw4 = _pool(x_nchw, h_tile)                      # (b,c,h,1), (b,c,1,w) f32
    x_h = xh4.reshape(b, c, h)
    x_w = xw4.reshape(b, c, w)

    # Stage A2: tiny attention path on both descriptors (one launch).
    a_h3, a_w3 = _atten(x_h, x_w, wt, scale, shift, dt)
    a_h = a_h3.reshape(b, c, h, 1)
    a_w = a_w3.reshape(b, c, 1, w)

    # Stage B: memory-bound tiled apply.
    return _apply(x_nchw, a_h, a_w, h_tile)               # (b, c, h, w)


# ---------------- pure-JAX reference (NCHW, mirrors the PyTorch code) ----------
def _ref_forward(x, conv_w, gamma, beta, mean, var, eps=1e-5):
    b, c, h, w = x.shape
    scale = gamma / jnp.sqrt(var + eps)
    shift = beta - mean * scale

    def dwconv(v):                               # v: (b, c, L)
        L = v.shape[-1]
        vp = jnp.pad(v, ((0, 0), (0, 0), (PAD, PAD)))
        out = jnp.zeros_like(v)
        for k in range(KS):
            out = out + vp[:, :, k:k + L] * conv_w[:, k][None, :, None]
        return out

    def bn(v):
        return v * scale[None, :, None] + shift[None, :, None]

    def hswish(t):
        return t * jnp.clip(t + 3.0, 0.0, 6.0) / 6.0

    x_h = x.mean(axis=3)                         # (b, c, h)
    x_w = x.mean(axis=2)                         # (b, c, w)
    a_h = jax.nn.sigmoid(dwconv(hswish(bn(dwconv(x_h)))))
    a_w = jax.nn.sigmoid(dwconv(hswish(bn(dwconv(x_w)))))
    return x * a_w[:, :, None, :] * a_h[:, :, :, None]


if __name__ == "__main__":
    b, c, h, w = 2, 4, 16, 16
    key = jax.random.PRNGKey(0)
    kx, kw, kg, kb = jax.random.split(key, 4)

    x = jax.random.normal(kx, (b, c, h, w), dtype=jnp.float32)

    # deterministic synthetic parameters (Conv1d(inp, inp, ks, groups=inp, bias=False))
    conv_w = 0.2 * jax.random.normal(kw, (c, KS), dtype=jnp.float32)
    bn_gamma = 1.0 + 0.1 * jax.random.normal(kg, (c,), dtype=jnp.float32)
    bn_beta = 0.05 * jax.random.normal(kb, (c,), dtype=jnp.float32)
    bn_mean = jnp.linspace(-0.1, 0.1, c, dtype=jnp.float32)
    bn_var = jnp.linspace(0.9, 1.1, c, dtype=jnp.float32)

    y = ca_atten(x, conv_w, bn_gamma, bn_beta, bn_mean, bn_var)
    y = jax.block_until_ready(y)

    y_ref = _ref_forward(x, conv_w, bn_gamma, bn_beta, bn_mean, bn_var)
    assert y.shape == (b, c, h, w)
    assert jnp.allclose(y, y_ref, atol=1e-5, rtol=1e-5), "mismatch vs reference"

    print("KERNEL_OK")
</pallas_src>

<mosaic_0001>
module attributes {stable_mosaic.version = 11 : i64} {
  func.func @_pool_kernel(%arg0: i32, %arg1: i32, %arg2: memref<1x4x16x16xf32, #tpu.memory_space<vmem>>, %arg3: memref<1x4x16x1xf32, #tpu.memory_space<vmem>>, %arg4: memref<1x4x1x16xf32, #tpu.memory_space<vmem>>) attributes {dimension_semantics = [#tpu.dimension_semantics<parallel>, #tpu.dimension_semantics<arbitrary>], iteration_bounds = array<i64: 2, 1>, scalar_prefetch = 0 : i64, scratch_operands = 0 : i64, tpu.core_type = #tpu.core_type<tc>, window_params = [{transform_indices = @transform_0, window_bounds = array<i64: 1, 4, 16, 16>}, {transform_indices = @transform_1, window_bounds = array<i64: 1, 4, 16, 1>}, {transform_indices = @transform_2, window_bounds = array<i64: 1, 4, 1, 16>}]} {
    %c0 = arith.constant 0 : index
    %c0_0 = arith.constant 0 : index
    %c0_1 = arith.constant 0 : index
    %c0_2 = arith.constant 0 : index
    %0 = vector.load %arg2[%c0, %c0_0, %c0_1, %c0_2] : memref<1x4x16x16xf32, #tpu.memory_space<vmem>>, vector<1x4x16x16xf32>
    %cst = arith.constant dense<0.000000e+00> : vector<1x4x16xf32>
    %1 = vector.multi_reduction <add>, %0, %cst [3] : vector<1x4x16x16xf32> to vector<1x4x16xf32>
    %2 = vector.shape_cast %1 : vector<1x4x16xf32> to vector<1x4x16x1xf32>
    %cst_3 = arith.constant 6.250000e-02 : f32
    %3 = vector.broadcast %cst_3 : f32 to vector<1x4x16x1xf32>
    %4 = arith.mulf %2, %3 : vector<1x4x16x1xf32>
    %c0_4 = arith.constant 0 : index
    %c0_5 = arith.constant 0 : index
    %c0_6 = arith.constant 0 : index
    %c0_7 = arith.constant 0 : index
    %5 = vector.load %arg3[%c0_4, %c0_5, %c0_6, %c0_7] : memref<1x4x16x1xf32, #tpu.memory_space<vmem>>, vector<1x4x16x1xf32>
    tpu.vector_store %arg3[%c0_4, %c0_5, %c0_6, %c0_7], %4 {strides = array<i32>} : memref<1x4x16x1xf32, #tpu.memory_space<vmem>>, vector<1x4x16x1xf32>,
    %cst_8 = arith.constant dense<0.000000e+00> : vector<1x4x16xf32>
    %6 = vector.multi_reduction <add>, %0, %cst_8 [2] : vector<1x4x16x16xf32> to vector<1x4x16xf32>
    %7 = vector.shape_cast %6 : vector<1x4x16xf32> to vector<1x4x1x16xf32>
    %cst_9 = arith.constant 6.250000e-02 : f32
    %8 = vector.broadcast %cst_9 : f32 to vector<1x4x1x16xf32>
    %9 = arith.mulf %7, %8 : vector<1x4x1x16xf32>
    %c0_i32 = arith.constant 0 : i32
    %10 = arith.cmpi eq, %arg1, %c0_i32 : i32
    %11 = arith.extui %10 : i1 to i32
    %c0_i32_10 = arith.constant 0 : i32
    %12 = arith.cmpi ne, %11, %c0_i32_10 : i32
    scf.if %12 {
      %cst_19 = arith.constant 0.000000e+00 : f32
      %16 = vector.broadcast %cst_19 : f32 to vector<1x4x1x16xf32>
      %c0_20 = arith.constant 0 : index
      %c0_21 = arith.constant 0 : index
      %c0_22 = arith.constant 0 : index
      %c0_23 = arith.constant 0 : index
      %17 = vector.load %arg4[%c0_20, %c0_21, %c0_22, %c0_23] : memref<1x4x1x16xf32, #tpu.memory_space<vmem>>, vector<1x4x1x16xf32>
      tpu.vector_store %arg4[%c0_20, %c0_21, %c0_22, %c0_23], %16 {strides = array<i32>} : memref<1x4x1x16xf32, #tpu.memory_space<vmem>>, vector<1x4x1x16xf32>,
    } else {
    }
    %c0_11 = arith.constant 0 : index
    %c0_12 = arith.constant 0 : index
    %c0_13 = arith.constant 0 : index
    %c0_14 = arith.constant 0 : index
    %13 = vector.load %arg4[%c0_11, %c0_12, %c0_13, %c0_14] : memref<1x4x1x16xf32, #tpu.memory_space<vmem>>, vector<1x4x1x16xf32>
    %14 = arith.addf %13, %9 : vector<1x4x1x16xf32>
    %c0_15 = arith.constant 0 : index
    %c0_16 = arith.constant 0 : index
    %c0_17 = arith.constant 0 : index
    %c0_18 = arith.constant 0 : index
    %15 = vector.load %arg4[%c0_15, %c0_16, %c0_17, %c0_18] : memref<1x4x1x16xf32, #tpu.memory_space<vmem>>, vector<1x4x1x16xf32>
    tpu.vector_store %arg4[%c0_15, %c0_16, %c0_17, %c0_18], %14 {strides = array<i32>} : memref<1x4x1x16xf32, #tpu.memory_space<vmem>>, vector<1x4x1x16xf32>,
    return
  }
  func.func @transform_0(%arg0: i32, %arg1: i32) -> (i32, i32, i32, i32) {
    %c0_i32 = arith.constant 0 : i32
    %c0_i32_0 = arith.constant 0 : i32
    %c0_i32_1 = arith.constant 0 : i32
    return %arg0, %c0_i32, %arg1, %c0_i32_0 : i32, i32, i32, i32
  }
  func.func @transform_1(%arg0: i32, %arg1: i32) -> (i32, i32, i32, i32) {
    %c0_i32 = arith.constant 0 : i32
    %c0_i32_0 = arith.constant 0 : i32
    %c0_i32_1 = arith.constant 0 : i32
    return %arg0, %c0_i32, %arg1, %c0_i32_0 : i32, i32, i32, i32
  }
  func.func @transform_2(%arg0: i32, %arg1: i32) -> (i32, i32, i32, i32) {
    %c0_i32 = arith.constant 0 : i32
    %c0_i32_0 = arith.constant 0 : i32
    %c0_i32_1 = arith.constant 0 : i32
    %c0_i32_2 = arith.constant 0 : i32
    return %arg0, %c0_i32, %c0_i32_0, %c0_i32_1 : i32, i32, i32, i32
  }
}

</mosaic_0001>

<llo_original>
// kernel: tpu_custom_call.1
$region0: #{tpu_custom_call.1}
  #allocation0 [shape = 'u32[]', space=smem, size = 0x4, offset = 0x4, fixed_abs, tag = 'smem constant byte address 0x4 - core index']
  #allocation1 [shape = 'u32[144,128]{1,0:T(1,128)}', space=vmem, size = 0x12000, scoped, tag = 'internal scratch']
  %s0 = inlined_call_operand.hbm [shape: f32[2,4,16,16], index: 0, kind: input, shape index: {}]
  %s1 = inlined_call_operand.vmem [shape: f32[2,4,16,1], index: 1, kind: output, shape index: {0}]
  %s2 = inlined_call_operand.hbm [shape: f32[2,4,1,16], index: 2, kind: output, shape index: {1}]
  %3 = xla_tuple %s1, %s2
  %s4 = sld [smem:[#allocation0]]
  $region53: #{tpu_custom_call.1} parent=0
    _
  %s6 = ssub.s32 1, %s4
  %s7 = scalar_select 0, %s6, %s4
  $region1: #{tpu_custom_call.1} parent=0
    #allocation2 [shape = 'u8[65536]{0}', space=vmem, size = 0x10000, scoped, tag = 'input window, operand 0']
    #allocation3 [shape = 's32[2]{0}', space=sflag, size = 0x8, scoped, tag = 'scoped memory for tpu_custom_call.1']
    #allocation4 [shape = 's32[2]{0}', space=sflag, size = 0x8, scoped, tag = 'scoped memory for tpu_custom_call.1']
    #allocation5 [shape = 'u8[4096]{0}', space=vmem, size = 0x1000, scoped, tag = 'output window, operand 1']
    %8 = vsyncpa [#allocation3], 0
    %s9 = scalar_lea.sflag [#allocation3], 1
    %10 = vsyncpa %s9, 0
    %11 = vsyncpa [#allocation4], 0
    %s12 = scalar_lea.sflag [#allocation4], 1
    %13 = vsyncpa %s12, 0
    loop: start=0, step=1, limit=4
    $region2: #{tpu_custom_call.1} parent=1 // loop_pre_header
      _
    $region3: #{tpu_custom_call.1} parent=1 // loop_header
      %s15 = sphi 0, %s19
      %p16 = scmp.ge.s32.totalorder %s15, 4
      %s22 = sphi 0, %s34
      %s23 = sphi 0, %s30
      %s24 = sphi 0, %s22
      %s25 = sphi 0, %s23
      %s26 = sphi 0, %s24
      %s27 = sphi 0, %s25
      %s39 = sphi 0, %s41
      %s42 = sphi 0, %s39
      %s43 = sphi 0, %s42
      %s59 = sphi 0, %s43
      %s67 = sphi 0, %s69
      %s70 = sphi 0, %s67
      %s71 = sphi 0, %s70
      %s87 = sphi 0, %s71
      %s93 = sphi 0, %s95
      %s96 = sphi 0, %s93
      %s97 = sphi 0, %s96
      %s113 = sphi 0, %s97
    $region4: #{tpu_custom_call.1} parent=1 // loop_header_branch
      %18 = sbr.rel (%p16) target = $region8
    $region5: #{tpu_custom_call.1} parent=1 // loop_body
      %s20 = ssub.s32 %s15, 1
      %s21 = ssub.s32 %s15, 2
      %s28 = sadd.s32 1, %s23
      %p29 = scmp.ge.s32.totalorder %s28, 1
      %s30 = scalar_select %p29, 0, %s28
      %s31 = sadd.s32 1, %s22
      %s32 = scalar_select %p29, %s31, %s22
      %p33 = scmp.ge.s32.totalorder %s32, 2
      %s34 = scalar_select %p33, 0, %s32
      %s35 = ssub.s32 %s22, %s34
      %s36 = ssub.s32 %s23, %s30
      %s37 = sor.u32 %s35, %s36
      %p38 = scmp.eq.s32.totalorder %s37, 0
      %s40 = sadd.s32 %s39, 1
      %s41 = scalar_select %p38, %s39, %s40
      %p44 = pneg %p38
      %p45 = scmp.eq.s32.totalorder %s15, 1
      %p46 = por %p44, %p45
      %p47 = scmp.ne.s32.totalorder %s39, %s42
      %p48 = scmp.eq.s32.totalorder %s15, 0
      %p49 = por %p47, %p48
      %p50 = scmp.ne.s32.totalorder %s39, %s42
      %p51 = scmp.eq.s32.totalorder %s20, 1
      %p52 = por %p50, %p51
      %p53 = scmp.ne.s32.totalorder %s42, %s43
      %p54 = scmp.eq.s32.totalorder %s20, 0
      %p55 = por %p53, %p54
      %p56 = scmp.ne.s32.totalorder %s42, %s43
      %p57 = scmp.eq.s32.totalorder %s21, 1
      %p58 = por %p56, %p57
      %p60 = scmp.ne.s32.totalorder %s43, %s59
      %p61 = scmp.eq.s32.totalorder %s21, 0
      %p62 = por %p60, %p61
      %s63 = ssub.s32 %s22, %s34
      %s64 = ssub.s32 %s23, %s30
      %s65 = sor.u32 %s63, %s64
      %p66 = scmp.eq.s32.totalorder %s65, 0
      %s68 = sadd.s32 %s67, 1
      %s69 = scalar_select %p66, %s67, %s68
      %p72 = pneg %p66
      %p73 = scmp.eq.s32.totalorder %s15, 1
      %p74 = por %p72, %p73
      %p75 = scmp.ne.s32.totalorder %s67, %s70
      %p76 = scmp.eq.s32.totalorder %s15, 0
      %p77 = por %p75, %p76
      %p78 = scmp.ne.s32.totalorder %s67, %s70
      %p79 = scmp.eq.s32.totalorder %s20, 1
      %p80 = por %p78, %p79
      %p81 = scmp.ne.s32.totalorder %s70, %s71
      %p82 = scmp.eq.s32.totalorder %s20, 0
      %p83 = por %p81, %p82
      %p84 = scmp.ne.s32.totalorder %s70, %s71
      %p85 = scmp.eq.s32.totalorder %s21, 1
      %p86 = por %p84, %p85
      %p88 = scmp.ne.s32.totalorder %s71, %s87
      %p89 = scmp.eq.s32.totalorder %s21, 0
      %p90 = por %p88, %p89
      %s91 = ssub.s32 %s22, %s34
      %p92 = scmp.eq.s32.totalorder %s91, 0
      %s94 = sadd.s32 %s93, 1
      %s95 = scalar_select %p92, %s93, %s94
      %p98 = pneg %p92
      %p99 = scmp.eq.s32.totalorder %s15, 1
      %p100 = por %p98, %p99
      %p101 = scmp.ne.s32.totalorder %s93, %s96
      %p102 = scmp.eq.s32.totalorder %s15, 0
      %p103 = por %p101, %p102
      %p104 = scmp.ne.s32.totalorder %s93, %s96
      %p105 = scmp.eq.s32.totalorder %s20, 1
      %p106 = por %p104, %p105
      %p107 = scmp.ne.s32.totalorder %s96, %s97
      %p108 = scmp.eq.s32.totalorder %s20, 0
      %p109 = por %p107, %p108
      %p110 = scmp.ne.s32.totalorder %s96, %s97
      %p111 = scmp.eq.s32.totalorder %s21, 1
      %p112 = por %p110, %p111
      %p114 = scmp.ne.s32.totalorder %s97, %s113
      %p115 = scmp.eq.s32.totalorder %s21, 0
      %p116 = por %p114, %p115
      %p117 = scmp.le.s32.totalorder 1, %s15
      %p118 = scmp.lt.s32.totalorder %s15, 3
      %p119 = pnand %p117, %p118
      %p120 = pneg %p119
      // Predicated region
      $region9: #{tpu_custom_call.1} parent=5 // pred_check
        _
      $region10: #{tpu_custom_call.1} parent=5 // pred_check_branch
        %122 = sbr.rel (%p119) target = $region12
      $region11: #{tpu_custom_call.1} parent=5 // pred_region
        %s123 = ssub.s32 %s15, 1
      $region12: #{tpu_custom_call.1} parent=5 // pred_fallthru
        _
      %p124 = scmp.lt.s32.totalorder %s15, 2
      // Predicated region
      $region13: #{tpu_custom_call.1} parent=5 // pred_check
        %p125 = pneg %p124
      $region14: #{tpu_custom_call.1} parent=5 // pred_check_branch
        %127 = sbr.rel (%p125) target = $region16
      $region15: #{tpu_custom_call.1} parent=5 // pred_region
        // Predicated region
        $region17: #{tpu_custom_call.1} parent=15 // pred_check
          %p128 = pneg %p49
        $region18: #{tpu_custom_call.1} parent=15 // pred_check_branch
          %130 = sbr.rel (%p128) target = $region20
        $region19: #{tpu_custom_call.1} parent=15 // pred_region
          %s131 = sand.u32 %s39, 1
          %s132 = scalar_lea.sflag [#allocation3], %s131
          %s133 = sand.u32 %s39, 1
          %s134 = smul.addr %s133, 64
          %s135 = scalar_lea.vmem [#allocation2], %s134
          %s136 = smul.u32 2, %s23
          %s138 = ssub.s32 1024, 1024
          %139 = vsyncadd %s132, %s138
          %s140 = smul.addr %s22, 8
          %s141 = sadd.s32 %s136, %s140
          %s142 = smul.addr %s141, 128
          %s143 = scalar_lea.hbm %s0, %s142
          %s144 = sshll.u32 %s135, 4
          %s145 = int_to_ptr.vmem [resolvable:$true] %s144
          %150 = dma.hbm_to_vmem [thread:$0]  %s143, 1024, %s145, %s132, 128, 128, 8
        $region20: #{tpu_custom_call.1} parent=15 // pred_fallthru
          _
      $region16: #{tpu_custom_call.1} parent=5 // pred_fallthru
        _
      %p151 = scmp.le.s32.totalorder 1, %s15
      %p152 = scmp.lt.s32.totalorder %s15, 3
      %p153 = pnand %p151, %p152
      %p154 = pneg %p153
      // Predicated region
      $region21: #{tpu_custom_call.1} parent=5 // pred_check
        _
      $region22: #{tpu_custom_call.1} parent=5 // pred_check_branch
        %156 = sbr.rel (%p153) target = $region24
      $region23: #{tpu_custom_call.1} parent=5 // pred_region
        %s157 = ssub.s32 %s15, 1
        %s158 = sand.u32 %s42, 1
        %s159 = scalar_lea.sflag [#allocation3], %s158
        %s160 = sand.u32 %s42, 1
        %s161 = smul.addr %s160, 64
        %s162 = scalar_lea.vmem [#allocation2], %s161
        // Predicated region
        $region25: #{tpu_custom_call.1} parent=23 // pred_check
          %p163 = pneg %p55
        $region26: #{tpu_custom_call.1} parent=23 // pred_check_branch
          %165 = sbr.rel (%p163) target = $region28
        $region27: #{tpu_custom_call.1} parent=23 // pred_region
          %166 = dma.done %s159, 1024
        $region28: #{tpu_custom_call.1} parent=23 // pred_fallthru
          _
        %s167 = sand.u32 %s42, 1
        %s168 = scalar_lea.sflag [#allocation3], %s167
        %s169 = sand.u32 %s42, 1
        %s170 = smul.addr %s169, 64
        %s171 = scalar_lea.vmem [#allocation2], %s170
        %p172 = pneg %p55
        %p173 = pneg %p52
        %p174 = pneg %p83
        %p175 = pneg %p80
        %s176 = smul.u32 2, %s25
        %p177 = scmp.lt.s32.totalorder %s24, 1
        %s178 = scalar_select %p177, %s24, 1
        %p179 = scmp.lt.s32.totalorder %s176, 1
        %s180 = scalar_select %p179, %s176, 1
        %s181 = smul.addr %s178, 8
        %s182 = sadd.s32 %s180, %s181
        %s183 = smul.addr %s182, 8
        %s184 = scalar_lea.vmem %s1, %s183
        %p185 = pneg %p109
        %p186 = pneg %p106
        %s187 = sand.u32 %s96, 1
        %s188 = scalar_lea.sflag [#allocation4], %s187
        %s189 = sand.u32 %s96, 1
        %s190 = smul.addr %s189, 4
        %s191 = scalar_lea.vmem [#allocation5], %s190
        %s192 = smul.u32 2, %s25
        %s193 = smul.u32 2, %s25
        %p194 = scmp.lt.s32.totalorder %s24, 1
        %s195 = scalar_select %p194, %s24, 1
        %p196 = scmp.lt.s32.totalorder %s193, 1
        %s197 = scalar_select %p196, %s193, 1
        %s198 = smul.addr %s195, 8
        %s199 = sadd.s32 %s197, %s198
        %s200 = smul.addr %s199, 8
        %s201 = scalar_lea.vmem %s1, %s200
        %s202 = smul.u32 2, %s25
        %v203 = vld [vmem:[%s162] sm:$0xff]
        %v204 = vld [vmem:[%s162 + $0x8] sm:$0xff]
        %v205 = vld [vmem:[%s162 + $0x10] sm:$0xff]
        %v206 = vld [vmem:[%s162 + $0x18] sm:$0xff]
        %v207 = vld [vmem:[%s162 + $0x20] sm:$0xff]
        %v208 = vld [vmem:[%s162 + $0x28] sm:$0xff]
        %v209 = vld [vmem:[%s162 + $0x30] sm:$0xff]
        %v210 = vld [vmem:[%s162 + $0x38] sm:$0xff]
        %vm211 = vcmask 130048
        %v212 = vsel %vm211, %v203, 0.0
        %213 = vadd.xlane.f32.xlu0 %v212
        %v214 = vpop.xlane.xlu0 %213
        %v215 = vsel %vm211, %v204, 0.0
        %216 = vadd.xlane.f32.xlu0 %v215
        %v217 = vpop.xlane.xlu0 %216
        %v218 = vsel %vm211, %v205, 0.0
        %219 = vadd.xlane.f32.xlu0 %v218
        %v220 = vpop.xlane.xlu0 %219
        %v221 = vsel %vm211, %v206, 0.0
        %222 = vadd.xlane.f32.xlu0 %v221
        %v223 = vpop.xlane.xlu0 %222
        %v224 = vsel %vm211, %v207, 0.0
        %225 = vadd.xlane.f32.xlu0 %v224
        %v226 = vpop.xlane.xlu0 %225
        %v227 = vsel %vm211, %v208, 0.0
        %228 = vadd.xlane.f32.xlu0 %v227
        %v229 = vpop.xlane.xlu0 %228
        %v230 = vsel %vm211, %v209, 0.0
        %231 = vadd.xlane.f32.xlu0 %v230
        %v232 = vpop.xlane.xlu0 %231
        %v233 = vsel %vm211, %v210, 0.0
        %234 = vadd.xlane.f32.xlu0 %v233
        %v235 = vpop.xlane.xlu0 %234
        %v236 = vmul.f32 %v214, 0.0625
        %v237 = vmul.f32 %v217, 0.0625
        %v238 = vmul.f32 %v220, 0.0625
        %v239 = vmul.f32 %v223, 0.0625
        %v240 = vmul.f32 %v226, 0.0625
        %v241 = vmul.f32 %v229, 0.0625
        %v242 = vmul.f32 %v232, 0.0625
        %v243 = vmul.f32 %v235, 0.0625
        %vm244 = vcmask 7168
        %245 = vst.msk [vmem:[%s201] sm:$0xff] %vm244, %v236
        %246 = vst.msk [vmem:[%s201 + $0x8] sm:$0xff] %vm244, %v237
        %247 = vst.msk [vmem:[%s201 + $0x10] sm:$0xff] %vm244, %v238
        %248 = vst.msk [vmem:[%s201 + $0x18] sm:$0xff] %vm244, %v239
        %249 = vst.msk [vmem:[%s201 + $0x20] sm:$0xff] %vm244, %v240
        %250 = vst.msk [vmem:[%s201 + $0x28] sm:$0xff] %vm244, %v241
        %251 = vst.msk [vmem:[%s201 + $0x30] sm:$0xff] %vm244, %v242
        %252 = vst.msk [vmem:[%s201 + $0x38] sm:$0xff] %vm244, %v243
        %v253 = vadd.f32 %v212, %v215
        %v254 = vrot.slane %v253, 4
        %v255 = vadd.f32 %v253, %v254
        %v256 = vrot.slane %v255, 2
        %v257 = vadd.f32 %v255, %v256
        %v258 = vrot.slane %v257, 1
        %v259 = vadd.f32 %v257, %v258
        %v260 = vadd.f32 %v218, %v221
        %v261 = vrot.slane %v260, 4
        %v262 = vadd.f32 %v260, %v261
        %v263 = vrot.slane %v262, 2
        %v264 = vadd.f32 %v262, %v263
        %v265 = vrot.slane %v264, 1
        %v266 = vadd.f32 %v264, %v265
        %v267 = vadd.f32 %v224, %v227
        %v268 = vrot.slane %v267, 4
        %v269 = vadd.f32 %v267, %v268
        %v270 = vrot.slane %v269, 2
        %v271 = vadd.f32 %v269, %v270
        %v272 = vrot.slane %v271, 1
        %v273 = vadd.f32 %v271, %v272
        %v274 = vadd.f32 %v230, %v233
        %v275 = vrot.slane %v274, 4
        %v276 = vadd.f32 %v274, %v275
        %v277 = vrot.slane %v276, 2
        %v278 = vadd.f32 %v276, %v277
        %v279 = vrot.slane %v278, 1
        %v280 = vadd.f32 %v278, %v279
        %v281 = vmul.f32 %v259, 0.0625
        %v282 = vmul.f32 %v266, 0.0625
        %v283 = vmul.f32 %v273, 0.0625
        %v284 = vmul.f32 %v280, 0.0625
        %p285 = scmp.eq.s32.totalorder %s25, 0
        // Predicated region
        $region29: #{tpu_custom_call.1} parent=23 // pred_check
          %p286 = pneg %p285
        $region30: #{tpu_custom_call.1} parent=23 // pred_check_branch
          %288 = sbr.rel (%p286) target = $region32
        $region31: #{tpu_custom_call.1} parent=23 // pred_region
          %vm289 = vcmask 122880
          %290 = vst.msk [vmem:[%s191] sm:$0x1] %vm289, 0.0
          %291 = vst.msk [vmem:[%s191 + $0x1] sm:$0x1] %vm289, 0.0
          %292 = vst.msk [vmem:[%s191 + $0x2] sm:$0x1] %vm289, 0.0
          %293 = vst.msk [vmem:[%s191 + $0x3] sm:$0x1] %vm289, 0.0
        $region32: #{tpu_custom_call.1} parent=23 // pred_fallthru
          _
        %v294 = vld [vmem:[%s191] sm:$0x1]
        %v295 = vld [vmem:[%s191 + $0x1] sm:$0x1]
        %v296 = vld [vmem:[%s191 + $0x2] sm:$0x1]
        %v297 = vld [vmem:[%s191 + $0x3] sm:$0x1]
        %v298 = vadd.f32 %v294, %v281
        %v299 = vadd.f32 %v295, %v282
        %v300 = vadd.f32 %v296, %v283
        %v301 = vadd.f32 %v297, %v284
        %vm302 = vcmask 122880
        %303 = vst.msk [vmem:[%s191] sm:$0x1] %vm302, %v298
        %304 = vst.msk [vmem:[%s191 + $0x1] sm:$0x1] %vm302, %v299
        %305 = vst.msk [vmem:[%s191 + $0x2] sm:$0x1] %vm302, %v300
        %306 = vst.msk [vmem:[%s191 + $0x3] sm:$0x1] %vm302, %v301
        %s307 = smul.u32 2, %s25
        %p308 = scmp.lt.s32.totalorder %s24, 1
        %s309 = scalar_select %p308, %s24, 1
        %p310 = scmp.lt.s32.totalorder %s307, 1
        %s311 = scalar_select %p310, %s307, 1
        %s312 = smul.addr %s309, 8
        %s313 = sadd.s32 %s311, %s312
        %s314 = smul.addr %s313, 8
        %s315 = scalar_lea.vmem %s1, %s314
        %s316 = sand.u32 %s96, 1
        %s317 = scalar_lea.sflag [#allocation4], %s316
        %s318 = sand.u32 %s96, 1
        %s319 = smul.addr %s318, 4
        %s320 = scalar_lea.vmem [#allocation5], %s319
        // Predicated region
        $region33: #{tpu_custom_call.1} parent=23 // pred_check
          %p321 = pneg %p80
        $region34: #{tpu_custom_call.1} parent=23 // pred_check_branch
          %323 = sbr.rel (%p321) target = $region36
        $region35: #{tpu_custom_call.1} parent=23 // pred_region
          %s324 = smul.u32 2, %s25
        $region36: #{tpu_custom_call.1} parent=23 // pred_fallthru
          _
        // Predicated region
        $region37: #{tpu_custom_call.1} parent=23 // pred_check
          %p325 = pneg %p106
        $region38: #{tpu_custom_call.1} parent=23 // pred_check_branch
          %327 = sbr.rel (%p325) target = $region40
        $region39: #{tpu_custom_call.1} parent=23 // pred_region
          %s329 = ssub.s32 64, 64
          %330 = vsyncadd %s317, %s329
          %s331 = smul.addr %s24, 4
          %s332 = smul.addr %s331, 16
          %s333 = scalar_lea.hbm %s2, %s332
          %s334 = sshll.u32 %s320, 4
          %s335 = int_to_ptr.vmem [resolvable:$true] %s334
          %340 = dma.vmem_to_hbm [thread:$0]  %s335, 64, %s333, %s317, 16, 16, 1
        $region40: #{tpu_custom_call.1} parent=23 // pred_fallthru
          _
      $region24: #{tpu_custom_call.1} parent=5 // pred_fallthru
        _
      %p341 = scmp.le.s32.totalorder 2, %s15
      // Predicated region
      $region41: #{tpu_custom_call.1} parent=5 // pred_check
        %p342 = pneg %p341
      $region42: #{tpu_custom_call.1} parent=5 // pred_check_branch
        %344 = sbr.rel (%p342) target = $region44
      $region43: #{tpu_custom_call.1} parent=5 // pred_region
        %s345 = ssub.s32 %s15, 2
        // Predicated region
        $region45: #{tpu_custom_call.1} parent=43 // pred_check
          %p346 = pneg %p86
        $region46: #{tpu_custom_call.1} parent=43 // pred_check_branch
          %348 = sbr.rel (%p346) target = $region48
        $region47: #{tpu_custom_call.1} parent=43 // pred_region
          %s349 = smul.u32 2, %s27
          %p350 = scmp.lt.s32.totalorder %s26, 1
          %s351 = scalar_select %p350, %s26, 1
          %p352 = scmp.lt.s32.totalorder %s349, 1
          %s353 = scalar_select %p352, %s349, 1
          %s354 = smul.addr %s351, 8
          %s355 = sadd.s32 %s353, %s354
          %s356 = smul.addr %s355, 8
          %s357 = scalar_lea.vmem %s1, %s356
        $region48: #{tpu_custom_call.1} parent=43 // pred_fallthru
          _
        // Predicated region
        $region49: #{tpu_custom_call.1} parent=43 // pred_check
          %p358 = pneg %p112
        $region50: #{tpu_custom_call.1} parent=43 // pred_check_branch
          %360 = sbr.rel (%p358) target = $region52
        $region51: #{tpu_custom_call.1} parent=43 // pred_region
          %s361 = sand.u32 %s97, 1
          %s362 = scalar_lea.sflag [#allocation4], %s361
          %s363 = sand.u32 %s97, 1
          %s364 = smul.addr %s363, 4
          %s365 = scalar_lea.vmem [#allocation5], %s364
          %366 = dma.done %s362, 64
        $region52: #{tpu_custom_call.1} parent=43 // pred_fallthru
          _
      $region44: #{tpu_custom_call.1} parent=5 // pred_fallthru
        _
    $region6: #{tpu_custom_call.1} parent=1 // loop_footer
      %s19 = sadd.s32 1, %s15
    $region7: #{tpu_custom_call.1} parent=1 // loop_footer_branch
      %14 = sbr.rel target = $region3
    $region8: #{tpu_custom_call.1} parent=1 // loop_exit
      _
    %367 = vsyncpa [#allocation3], 1
    %s368 = scalar_lea.sflag [#allocation3], 1
    %369 = vsyncpa %s368, 1
    %370 = vsyncpa [#allocation4], 1
    %s371 = scalar_lea.sflag [#allocation4], 1
    %372 = vsyncpa %s371, 1

</llo_original>
